<compile_context>
chip_gen: v7x
topology: tpu7x:2x2x1
jax: 0.10.0
libtpu: 0.0.40
codegen_flags: <defaults>
</compile_context>

<pallas_src>
import math

import jax
import jax.numpy as jnp
from jax.experimental import pallas as pl
from jax.experimental.pallas import tpu as pltpu


def _vmem_budgets():
    """(tile byte budget, scoped-VMEM limit) sized per TPU generation."""
    cap = 64 * 1024 * 1024                    # conservative default: v7x VMEM / core
    try:
        cap = int(pltpu.get_tpu_info().vmem_capacity_bytes)
    except Exception:                         # interpret mode / older jax: keep default
        pass
    limit = int(min(cap // 2, 64 * 1024 * 1024))
    tile_budget = int(max(limit - 8 * 1024 * 1024, 8 * 1024 * 1024))
    return tile_budget, limit


# --------------------------------------------------------------------------- #
# Kernel 1: class axis on sublanes, spatial axis on lanes (native NCHW layout) #
# --------------------------------------------------------------------------- #
def _ce_nchw_kernel(logits_ref, target_ref, weights_ref, out_ref):
    # logits_ref : (1, C, TS)   input dtype (f32 or bf16)
    # target_ref : (1, 1, TS)   int32
    # weights_ref: (1, 1, TS)   float32
    # out_ref    : (1, 1, TS)   float32 per-batch partial sums (lane-dense acc)
    s = pl.program_id(1)

    @pl.when(s == 0)
    def _init():
        out_ref[...] = jnp.zeros_like(out_ref)

    x = logits_ref[0].astype(jnp.float32)                       # (C, TS)
    m = jnp.max(x, axis=0, keepdims=True)                       # (1, TS)
    lse = jnp.log(jnp.sum(jnp.exp(x - m), axis=0, keepdims=True)) + m

    # Gather x at the target class with a one-hot select (no dynamic gather on TPU).
    cls = jax.lax.broadcasted_iota(jnp.int32, x.shape, 0)       # (C, TS)
    gathered = jnp.sum(jnp.where(cls == target_ref[0], x, 0.0),
                       axis=0, keepdims=True)                   # (1, TS)

    # loss = -w * log_softmax(x)[target] = w * (lse - x[target])  (no logp tile)
    loss = weights_ref[0] * (lse - gathered)                    # (1, TS)
    out_ref[0] = out_ref[0] + loss


def _ce_sum_nchw(logits3, target3, weights3):
    """Sum of per-element weighted NLL. logits3 is (B, C, S) in its native layout."""
    B, C, S = logits3.shape
    tile_budget, vmem_limit = _vmem_budgets()
    itemsize = jnp.dtype(logits3.dtype).itemsize
    # Bytes per spatial column across all double-buffered blocks:
    # logits column (C * itemsize) + target/weights/out columns (3 * 4 B).
    per_col = 2 * (C * itemsize + 3 * 4)
    max_cols = max(128, tile_budget // per_col)
    if S <= max_cols:
        ts, s_pad = S, S                      # whole spatial extent in one block
    else:
        ts = (max_cols // 128) * 128          # lane-aligned spatial tile
        s_pad = ((S + ts - 1) // ts) * ts
    if s_pad != S:
        pad = s_pad - S                       # zero-padded tail: weight 0 => loss 0
        logits3 = jnp.pad(logits3, ((0, 0), (0, 0), (0, pad)))
        target3 = jnp.pad(target3, ((0, 0), (0, 0), (0, pad)))
        weights3 = jnp.pad(weights3, ((0, 0), (0, 0), (0, pad)))

    grid = (B, s_pad // ts)                   # batch = parallel axis (v7x megacore)
    partials = pl.pallas_call(
        _ce_nchw_kernel,
        out_shape=jax.ShapeDtypeStruct((B, 1, ts), jnp.float32),
        grid_spec=pltpu.PrefetchScalarGridSpec(
            num_scalar_prefetch=0,
            grid=grid,
            in_specs=[
                pl.BlockSpec((1, C, ts), lambda b, s: (b, 0, s)),
                pl.BlockSpec((1, 1, ts), lambda b, s: (b, 0, s)),
                pl.BlockSpec((1, 1, ts), lambda b, s: (b, 0, s)),
            ],
            out_specs=pl.BlockSpec((1, 1, ts), lambda b, s: (b, 0, 0)),
        ),
        compiler_params=pltpu.CompilerParams(
            dimension_semantics=("parallel", "arbitrary"),
            vmem_limit_bytes=vmem_limit),
    )(logits3, target3, weights3)
    return jnp.sum(partials)


# ----------------------------------------------------------------------- #
# Kernel 2: rows on sublanes, class axis on lanes (2-D / large-C fallback) #
# ----------------------------------------------------------------------- #
def _ce_rows_kernel(logits_ref, target_ref, weights_ref, out_ref):
    # logits_ref : (TR, C)     input dtype
    # target_ref : (TR, 1)     int32
    # weights_ref: (TR, 1)     float32
    # out_ref    : (1, TR, 1)  float32 per-outer-slice partial sums
    i = pl.program_id(1)

    @pl.when(i == 0)
    def _init():
        out_ref[...] = jnp.zeros_like(out_ref)

    x = logits_ref[...].astype(jnp.float32)                     # (TR, C)
    m = jnp.max(x, axis=1, keepdims=True)                       # (TR, 1)
    lse = jnp.log(jnp.sum(jnp.exp(x - m), axis=1, keepdims=True)) + m

    cls = jax.lax.broadcasted_iota(jnp.int32, x.shape, 1)       # (TR, C)
    gathered = jnp.sum(jnp.where(cls == target_ref[...], x, 0.0),
                       axis=1, keepdims=True)                   # (TR, 1)

    loss = weights_ref[...] * (lse - gathered)                  # (TR, 1)
    out_ref[...] = out_ref[...] + loss[None]


def _ce_sum_rows(logits2d, target, weights):
    """Sum of per-element weighted NLL. logits2d is (R, C), classes on lanes."""
    R, C = logits2d.shape
    tile_budget, vmem_limit = _vmem_budgets()
    itemsize = jnp.dtype(logits2d.dtype).itemsize
    # Bytes per row: double-buffered logits row + the lane-padded (TR, 1)
    # target / weights / output blocks (each padded to 128 lanes in VMEM).
    per_row = 2 * C * itemsize + 3 * 2 * 128 * 4
    max_rows = max(8, tile_budget // per_row)
    tr = min(1024, max_rows, ((R + 7) // 8) * 8)
    tr = max(8, (tr // 8) * 8)

    num_blocks = (R + tr - 1) // tr
    if num_blocks > 1 and num_blocks % 2:
        num_blocks += 1                       # enable a 2-way parallel split
    r_pad = num_blocks * tr

    tgt = target.reshape(-1, 1)
    wts = weights.reshape(-1, 1)
    if r_pad != R:
        pad = r_pad - R                       # zero rows: weight 0 => loss 0
        logits2d = jnp.pad(logits2d, ((0, pad), (0, 0)))
        tgt = jnp.pad(tgt, ((0, pad), (0, 0)))
        wts = jnp.pad(wts, ((0, pad), (0, 0)))

    g_outer = 2 if (num_blocks > 1 and num_blocks % 2 == 0) else 1
    g_inner = num_blocks // g_outer
    grid = (g_outer, g_inner)

    partials = pl.pallas_call(
        _ce_rows_kernel,
        out_shape=jax.ShapeDtypeStruct((g_outer, tr, 1), jnp.float32),
        grid_spec=pltpu.PrefetchScalarGridSpec(
            num_scalar_prefetch=0,
            grid=grid,
            in_specs=[
                pl.BlockSpec((tr, C), lambda o, i: (o * g_inner + i, 0)),
                pl.BlockSpec((tr, 1), lambda o, i: (o * g_inner + i, 0)),
                pl.BlockSpec((tr, 1), lambda o, i: (o * g_inner + i, 0)),
            ],
            out_specs=pl.BlockSpec((1, tr, 1), lambda o, i: (o, 0, 0)),
        ),
        compiler_params=pltpu.CompilerParams(
            dimension_semantics=("parallel", "arbitrary"),
            vmem_limit_bytes=vmem_limit),
    )(logits2d, tgt, wts)
    return jnp.sum(partials)


# ---------------- #
# Public entry     #
# ---------------- #
def cross_entropy_loss(logits, target, weights, reduction="mean"):
    """Replicates CrossEntropyLoss.forward from the PyTorch module."""
    if logits.ndim > 2:
        B, C = logits.shape[0], logits.shape[1]
        S = int(math.prod(logits.shape[2:]))
        n_rows = B * S
        tile_budget, _ = _vmem_budgets()
        itemsize = jnp.dtype(logits.dtype).itemsize
        if 2 * C * 128 * itemsize <= tile_budget:
            # Transpose-free path: class axis on sublanes, spatial axis on lanes.
            total = _ce_sum_nchw(
                logits.reshape(B, C, S),
                target.reshape(B, 1, S).astype(jnp.int32),
                weights.reshape(B, 1, S).astype(jnp.float32))
        else:
            # Huge class count: fall back to the rows-x-classes layout (same
            # reshuffle the PyTorch module performs).
            logits2d = jnp.transpose(logits.reshape(B, C, S), (0, 2, 1)).reshape(-1, C)
            total = _ce_sum_rows(logits2d,
                                 target.reshape(-1).astype(jnp.int32),
                                 weights.reshape(-1).astype(jnp.float32))
    else:
        n_rows = logits.shape[0]
        total = _ce_sum_rows(logits,
                             target.reshape(-1).astype(jnp.int32),
                             weights.reshape(-1).astype(jnp.float32))

    if reduction == "mean":
        # Module semantics: plain mean over rows (the module applies per-element
        # weights itself and then calls .mean(); no class-weight renormalisation).
        return total / jnp.float32(n_rows)
    # 'sum' -- and the module's reduction='none' branch also ends in
    # torch.sum(loss, 0), which equals this total.
    return total


# Pure-JAX reference mirroring the PyTorch forward.
def _reference(logits, target, weights, reduction="mean"):
    if logits.ndim > 2:
        B, C = logits.shape[0], logits.shape[1]
        x = jnp.transpose(logits.reshape(B, C, -1), (0, 2, 1)).reshape(-1, C)
    else:
        x = logits
    logp = jax.nn.log_softmax(x.astype(jnp.float32), axis=1)
    gathered = jnp.take_along_axis(logp, target.reshape(-1, 1), axis=1).reshape(-1)
    loss = -gathered * weights.reshape(-1)
    return jnp.mean(loss) if reduction == "mean" else jnp.sum(loss)


if __name__ == "__main__":
    key = jax.random.PRNGKey(0)
    k1, k2, k3, k4, k5, k6 = jax.random.split(key, 6)

    # 1) NCHW segmentation-style case (the module's primary use).
    B, C, H, W = 2, 4, 16, 16
    logits = jax.random.normal(k1, (B, C, H, W), dtype=jnp.float32)
    target = jax.random.randint(k2, (B, H, W), 0, C, dtype=jnp.int32)
    weights = jax.random.uniform(k3, (B * H * W,), dtype=jnp.float32)

    out = jax.block_until_ready(cross_entropy_loss(logits, target, weights))
    ref = _reference(logits, target, weights, "mean")
    assert jnp.allclose(out, ref, atol=1e-5, rtol=1e-5), (out, ref)

    # 2) Flat (rows x classes) case exercising the general kernel and 'sum'.
    R2, C2 = 2048, 128
    logits2 = jax.random.normal(k4, (R2, C2), dtype=jnp.float32)
    target2 = jax.random.randint(k5, (R2,), 0, C2, dtype=jnp.int32)
    weights2 = jax.random.uniform(k6, (R2,), dtype=jnp.float32)

    out2 = jax.block_until_ready(
        cross_entropy_loss(logits2, target2, weights2, reduction="sum"))
    ref2 = _reference(logits2, target2, weights2, "sum")
    assert jnp.allclose(out2, ref2, atol=1e-3, rtol=1e-4), (out2, ref2)

    print("KERNEL_OK")
</pallas_src>

<mosaic_0001>
module attributes {stable_mosaic.version = 11 : i64} {
  func.func @_ce_nchw_kernel(%arg0: i32, %arg1: i32, %arg2: memref<1x4x256xf32, #tpu.memory_space<vmem>>, %arg3: memref<1x1x256xi32, #tpu.memory_space<vmem>>, %arg4: memref<1x1x256xf32, #tpu.memory_space<vmem>>, %arg5: memref<1x1x256xf32, #tpu.memory_space<vmem>>) attributes {dimension_semantics = [#tpu.dimension_semantics<parallel>, #tpu.dimension_semantics<arbitrary>], iteration_bounds = array<i64: 2, 1>, scalar_prefetch = 0 : i64, scratch_operands = 0 : i64, tpu.core_type = #tpu.core_type<tc>, window_params = [{transform_indices = @transform_0, window_bounds = array<i64: 1, 4, 256>}, {transform_indices = @transform_1, window_bounds = array<i64: 1, 1, 256>}, {transform_indices = @transform_2, window_bounds = array<i64: 1, 1, 256>}, {transform_indices = @transform_3, window_bounds = array<i64: 1, 1, 256>}]} {
    %c0_i32 = arith.constant 0 : i32
    %0 = arith.cmpi eq, %arg1, %c0_i32 : i32
    %1 = arith.extui %0 : i1 to i32
    %c0_i32_0 = arith.constant 0 : i32
    %2 = arith.cmpi ne, %1, %c0_i32_0 : i32
    scf.if %2 {
      %cst_18 = arith.constant 0.000000e+00 : f32
      %33 = vector.broadcast %cst_18 : f32 to vector<1x1x256xf32>
      %c0_19 = arith.constant 0 : index
      %c0_20 = arith.constant 0 : index
      %c0_21 = arith.constant 0 : index
      %34 = vector.load %arg5[%c0_19, %c0_20, %c0_21] : memref<1x1x256xf32, #tpu.memory_space<vmem>>, vector<1x1x256xf32>
      tpu.vector_store %arg5[%c0_19, %c0_20, %c0_21], %33 {strides = array<i32>} : memref<1x1x256xf32, #tpu.memory_space<vmem>>, vector<1x1x256xf32>,
    } else {
    }
    %c0 = arith.constant 0 : index
    %c0_1 = arith.constant 0 : index
    %c0_2 = arith.constant 0 : index
    %3 = vector.load %arg2[%c0, %c0_1, %c0_2] : memref<1x4x256xf32, #tpu.memory_space<vmem>>, vector<1x4x256xf32>
    %4 = vector.shape_cast %3 : vector<1x4x256xf32> to vector<4x256xf32>
    %cst = arith.constant dense<0xFF800000> : vector<256xf32>
    %5 = vector.multi_reduction <maximumf>, %4, %cst [0] : vector<4x256xf32> to vector<256xf32>
    %6 = vector.shape_cast %5 : vector<256xf32> to vector<1x256xf32>
    %7 = vector.broadcast %6 : vector<1x256xf32> to vector<4x256xf32>
    %8 = arith.subf %4, %7 : vector<4x256xf32>
    %9 = math.exp %8 : vector<4x256xf32>
    %cst_3 = arith.constant dense<0.000000e+00> : vector<256xf32>
    %10 = vector.multi_reduction <add>, %9, %cst_3 [0] : vector<4x256xf32> to vector<256xf32>
    %11 = vector.shape_cast %10 : vector<256xf32> to vector<1x256xf32>
    %12 = math.log %11 : vector<1x256xf32>
    %13 = arith.addf %12, %6 : vector<1x256xf32>
    %14 = tpu.iota {dimensions = array<i32: 0>} : vector<4x256xi32>
    %c0_4 = arith.constant 0 : index
    %c0_5 = arith.constant 0 : index
    %c0_6 = arith.constant 0 : index
    %15 = vector.load %arg3[%c0_4, %c0_5, %c0_6] : memref<1x1x256xi32, #tpu.memory_space<vmem>>, vector<1x1x256xi32>
    %16 = vector.shape_cast %15 : vector<1x1x256xi32> to vector<1x256xi32>
    %17 = vector.broadcast %16 : vector<1x256xi32> to vector<4x256xi32>
    %18 = arith.cmpi eq, %14, %17 : vector<4x256xi32>
    %cst_7 = arith.constant 0.000000e+00 : f32
    %19 = vector.broadcast %cst_7 : f32 to vector<4x256xf32>
    %20 = arith.select %18, %4, %19 : vector<4x256xi1>, vector<4x256xf32>
    %cst_8 = arith.constant dense<0.000000e+00> : vector<256xf32>
    %21 = vector.multi_reduction <add>, %20, %cst_8 [0] : vector<4x256xf32> to vector<256xf32>
    %22 = vector.shape_cast %21 : vector<256xf32> to vector<1x256xf32>
    %c0_9 = arith.constant 0 : index
    %c0_10 = arith.constant 0 : index
    %c0_11 = arith.constant 0 : index
    %23 = vector.load %arg4[%c0_9, %c0_10, %c0_11] : memref<1x1x256xf32, #tpu.memory_space<vmem>>, vector<1x1x256xf32>
    %24 = vector.shape_cast %23 : vector<1x1x256xf32> to vector<1x256xf32>
    %25 = arith.subf %13, %22 : vector<1x256xf32>
    %26 = arith.mulf %24, %25 : vector<1x256xf32>
    %c0_12 = arith.constant 0 : index
    %c0_13 = arith.constant 0 : index
    %c0_14 = arith.constant 0 : index
    %27 = vector.load %arg5[%c0_12, %c0_13, %c0_14] : memref<1x1x256xf32, #tpu.memory_space<vmem>>, vector<1x1x256xf32>
    %28 = vector.shape_cast %27 : vector<1x1x256xf32> to vector<1x256xf32>
    %29 = arith.addf %28, %26 : vector<1x256xf32>
    %c0_15 = arith.constant 0 : index
    %c0_16 = arith.constant 0 : index
    %c0_17 = arith.constant 0 : index
    %30 = vector.load %arg5[%c0_15, %c0_16, %c0_17] : memref<1x1x256xf32, #tpu.memory_space<vmem>>, vector<1x1x256xf32>
    %31 = vector.shape_cast %30 : vector<1x1x256xf32> to vector<1x256xf32>
    %32 = vector.shape_cast %29 : vector<1x256xf32> to vector<1x1x256xf32>
    tpu.vector_store %arg5[%c0_15, %c0_16, %c0_17], %32 {strides = array<i32>} : memref<1x1x256xf32, #tpu.memory_space<vmem>>, vector<1x1x256xf32>,
    return
  }
  func.func @transform_0(%arg0: i32, %arg1: i32) -> (i32, i32, i32) {
    %c0_i32 = arith.constant 0 : i32
    %c0_i32_0 = arith.constant 0 : i32
    return %arg0, %c0_i32, %arg1 : i32, i32, i32
  }
  func.func @transform_1(%arg0: i32, %arg1: i32) -> (i32, i32, i32) {
    %c0_i32 = arith.constant 0 : i32
    %c0_i32_0 = arith.constant 0 : i32
    return %arg0, %c0_i32, %arg1 : i32, i32, i32
  }
  func.func @transform_2(%arg0: i32, %arg1: i32) -> (i32, i32, i32) {
    %c0_i32 = arith.constant 0 : i32
    %c0_i32_0 = arith.constant 0 : i32
    return %arg0, %c0_i32, %arg1 : i32, i32, i32
  }
  func.func @transform_3(%arg0: i32, %arg1: i32) -> (i32, i32, i32) {
    %c0_i32 = arith.constant 0 : i32
    %c0_i32_0 = arith.constant 0 : i32
    %c0_i32_1 = arith.constant 0 : i32
    return %arg0, %c0_i32, %c0_i32_0 : i32, i32, i32
  }
}

</mosaic_0001>

<llo_original>
// kernel: tpu_custom_call.1
$region0: #{tpu_custom_call.1}
  #allocation0 [shape = 'u32[]', space=smem, size = 0x4, offset = 0x4, fixed_abs, tag = 'smem constant byte address 0x4 - core index']
  #allocation1 [shape = 'u32[144,128]{1,0:T(1,128)}', space=vmem, size = 0x12000, scoped, tag = 'internal scratch']
  %s0 = inlined_call_operand.hbm [shape: f32[2,4,256], index: 0, kind: input, shape index: {}]
  %s1 = inlined_call_operand.hbm [shape: s32[2,1,256], index: 1, kind: input, shape index: {}]
  %s2 = inlined_call_operand.vmem [shape: f32[2,1,256], index: 2, kind: input, shape index: {}]
  %s3 = inlined_call_operand.hbm [shape: f32[2,1,256], index: 3, kind: output, shape index: {}]
  %s4 = sld [smem:[#allocation0]]
  $region57: #{tpu_custom_call.1} parent=0
    _
  %s6 = ssub.s32 1, %s4
  %s7 = scalar_select 0, %s6, %s4
  $region1: #{tpu_custom_call.1} parent=0
    #allocation2 [shape = 'u8[8192]{0}', space=vmem, size = 0x2000, scoped, tag = 'input window, operand 0']
    #allocation3 [shape = 's32[2]{0}', space=sflag, size = 0x8, scoped, tag = 'scoped memory for tpu_custom_call.1']
    #allocation4 [shape = 's32[2]{0}', space=sflag, size = 0x8, scoped, tag = 'scoped memory for tpu_custom_call.1']
    #allocation5 [shape = 'u8[2048]{0}', space=vmem, size = 0x800, scoped, tag = 'input window, operand 1']
    #allocation6 [shape = 's32[2]{0}', space=sflag, size = 0x8, scoped, tag = 'scoped memory for tpu_custom_call.1']
    #allocation7 [shape = 'u8[2048]{0}', space=vmem, size = 0x800, scoped, tag = 'output window, operand 0']
    %8 = vsyncpa [#allocation3], 0
    %s9 = scalar_lea.sflag [#allocation3], 1
    %10 = vsyncpa %s9, 0
    %11 = vsyncpa [#allocation6], 0
    %s12 = scalar_lea.sflag [#allocation6], 1
    %13 = vsyncpa %s12, 0
    %14 = vsyncpa [#allocation4], 0
    %s15 = scalar_lea.sflag [#allocation4], 1
    %16 = vsyncpa %s15, 0
    loop: start=0, step=1, limit=4
    $region2: #{tpu_custom_call.1} parent=1 // loop_pre_header
      _
    $region3: #{tpu_custom_call.1} parent=1 // loop_header
      %s18 = sphi 0, %s22
      %p19 = scmp.ge.s32.totalorder %s18, 4
      %s25 = sphi 0, %s37
      %s26 = sphi 0, %s33
      %s27 = sphi 0, %s25
      %s28 = sphi 0, %s26
      %s29 = sphi 0, %s27
      %s30 = sphi 0, %s28
      %s42 = sphi 0, %s44
      %s45 = sphi 0, %s42
      %s46 = sphi 0, %s45
      %s62 = sphi 0, %s46
      %s70 = sphi 0, %s72
      %s73 = sphi 0, %s70
      %s74 = sphi 0, %s73
      %s90 = sphi 0, %s74
      %s98 = sphi 0, %s100
      %s101 = sphi 0, %s98
      %s102 = sphi 0, %s101
      %s118 = sphi 0, %s102
      %s124 = sphi 0, %s126
      %s127 = sphi 0, %s124
      %s128 = sphi 0, %s127
      %s144 = sphi 0, %s128
    $region4: #{tpu_custom_call.1} parent=1 // loop_header_branch
      %21 = sbr.rel (%p19) target = $region8
    $region5: #{tpu_custom_call.1} parent=1 // loop_body
      %s23 = ssub.s32 %s18, 1
      %s24 = ssub.s32 %s18, 2
      %s31 = sadd.s32 1, %s26
      %p32 = scmp.ge.s32.totalorder %s31, 1
      %s33 = scalar_select %p32, 0, %s31
      %s34 = sadd.s32 1, %s25
      %s35 = scalar_select %p32, %s34, %s25
      %p36 = scmp.ge.s32.totalorder %s35, 2
      %s37 = scalar_select %p36, 0, %s35
      %s38 = ssub.s32 %s25, %s37
      %s39 = ssub.s32 %s26, %s33
      %s40 = sor.u32 %s38, %s39
      %p41 = scmp.eq.s32.totalorder %s40, 0
      %s43 = sadd.s32 %s42, 1
      %s44 = scalar_select %p41, %s42, %s43
      %p47 = pneg %p41
      %p48 = scmp.eq.s32.totalorder %s18, 1
      %p49 = por %p47, %p48
      %p50 = scmp.ne.s32.totalorder %s42, %s45
      %p51 = scmp.eq.s32.totalorder %s18, 0
      %p52 = por %p50, %p51
      %p53 = scmp.ne.s32.totalorder %s42, %s45
      %p54 = scmp.eq.s32.totalorder %s23, 1
      %p55 = por %p53, %p54
      %p56 = scmp.ne.s32.totalorder %s45, %s46
      %p57 = scmp.eq.s32.totalorder %s23, 0
      %p58 = por %p56, %p57
      %p59 = scmp.ne.s32.totalorder %s45, %s46
      %p60 = scmp.eq.s32.totalorder %s24, 1
      %p61 = por %p59, %p60
      %p63 = scmp.ne.s32.totalorder %s46, %s62
      %p64 = scmp.eq.s32.totalorder %s24, 0
      %p65 = por %p63, %p64
      %s66 = ssub.s32 %s25, %s37
      %s67 = ssub.s32 %s26, %s33
      %s68 = sor.u32 %s66, %s67
      %p69 = scmp.eq.s32.totalorder %s68, 0
      %s71 = sadd.s32 %s70, 1
      %s72 = scalar_select %p69, %s70, %s71
      %p75 = pneg %p69
      %p76 = scmp.eq.s32.totalorder %s18, 1
      %p77 = por %p75, %p76
      %p78 = scmp.ne.s32.totalorder %s70, %s73
      %p79 = scmp.eq.s32.totalorder %s18, 0
      %p80 = por %p78, %p79
      %p81 = scmp.ne.s32.totalorder %s70, %s73
      %p82 = scmp.eq.s32.totalorder %s23, 1
      %p83 = por %p81, %p82
      %p84 = scmp.ne.s32.totalorder %s73, %s74
      %p85 = scmp.eq.s32.totalorder %s23, 0
      %p86 = por %p84, %p85
      %p87 = scmp.ne.s32.totalorder %s73, %s74
      %p88 = scmp.eq.s32.totalorder %s24, 1
      %p89 = por %p87, %p88
      %p91 = scmp.ne.s32.totalorder %s74, %s90
      %p92 = scmp.eq.s32.totalorder %s24, 0
      %p93 = por %p91, %p92
      %s94 = ssub.s32 %s25, %s37
      %s95 = ssub.s32 %s26, %s33
      %s96 = sor.u32 %s94, %s95
      %p97 = scmp.eq.s32.totalorder %s96, 0
      %s99 = sadd.s32 %s98, 1
      %s100 = scalar_select %p97, %s98, %s99
      %p103 = pneg %p97
      %p104 = scmp.eq.s32.totalorder %s18, 1
      %p105 = por %p103, %p104
      %p106 = scmp.ne.s32.totalorder %s98, %s101
      %p107 = scmp.eq.s32.totalorder %s18, 0
      %p108 = por %p106, %p107
      %p109 = scmp.ne.s32.totalorder %s98, %s101
      %p110 = scmp.eq.s32.totalorder %s23, 1
      %p111 = por %p109, %p110
      %p112 = scmp.ne.s32.totalorder %s101, %s102
      %p113 = scmp.eq.s32.totalorder %s23, 0
      %p114 = por %p112, %p113
      %p115 = scmp.ne.s32.totalorder %s101, %s102
      %p116 = scmp.eq.s32.totalorder %s24, 1
      %p117 = por %p115, %p116
      %p119 = scmp.ne.s32.totalorder %s102, %s118
      %p120 = scmp.eq.s32.totalorder %s24, 0
      %p121 = por %p119, %p120
      %s122 = ssub.s32 %s25, %s37
      %p123 = scmp.eq.s32.totalorder %s122, 0
      %s125 = sadd.s32 %s124, 1
      %s126 = scalar_select %p123, %s124, %s125
      %p129 = pneg %p123
      %p130 = scmp.eq.s32.totalorder %s18, 1
      %p131 = por %p129, %p130
      %p132 = scmp.ne.s32.totalorder %s124, %s127
      %p133 = scmp.eq.s32.totalorder %s18, 0
      %p134 = por %p132, %p133
      %p135 = scmp.ne.s32.totalorder %s124, %s127
      %p136 = scmp.eq.s32.totalorder %s23, 1
      %p137 = por %p135, %p136
      %p138 = scmp.ne.s32.totalorder %s127, %s128
      %p139 = scmp.eq.s32.totalorder %s23, 0
      %p140 = por %p138, %p139
      %p141 = scmp.ne.s32.totalorder %s127, %s128
      %p142 = scmp.eq.s32.totalorder %s24, 1
      %p143 = por %p141, %p142
      %p145 = scmp.ne.s32.totalorder %s128, %s144
      %p146 = scmp.eq.s32.totalorder %s24, 0
      %p147 = por %p145, %p146
      %p148 = scmp.le.s32.totalorder 1, %s18
      %p149 = scmp.lt.s32.totalorder %s18, 3
      %p150 = pnand %p148, %p149
      %p151 = pneg %p150
      // Predicated region
      $region9: #{tpu_custom_call.1} parent=5 // pred_check
        _
      $region10: #{tpu_custom_call.1} parent=5 // pred_check_branch
        %153 = sbr.rel (%p150) target = $region12
      $region11: #{tpu_custom_call.1} parent=5 // pred_region
        %s154 = ssub.s32 %s18, 1
      $region12: #{tpu_custom_call.1} parent=5 // pred_fallthru
        _
      %p155 = scmp.lt.s32.totalorder %s18, 2
      // Predicated region
      $region13: #{tpu_custom_call.1} parent=5 // pred_check
        %p156 = pneg %p155
      $region14: #{tpu_custom_call.1} parent=5 // pred_check_branch
        %158 = sbr.rel (%p156) target = $region16
      $region15: #{tpu_custom_call.1} parent=5 // pred_region
        // Predicated region
        $region17: #{tpu_custom_call.1} parent=15 // pred_check
          %p159 = pneg %p52
        $region18: #{tpu_custom_call.1} parent=15 // pred_check_branch
          %161 = sbr.rel (%p159) target = $region20
        $region19: #{tpu_custom_call.1} parent=15 // pred_region
          %s162 = sand.u32 %s42, 1
          %s163 = scalar_lea.sflag [#allocation3], %s162
          %s164 = sand.u32 %s42, 1
          %s165 = smul.addr %s164, 8
          %s166 = scalar_lea.vmem [#allocation2], %s165
          %s167 = smul.u32 2, %s26
          %s169 = ssub.s32 128, 128
          %170 = vsyncadd %s163, %s169
          %s171 = smul.addr %s25, 2
          %s172 = sadd.s32 %s167, %s171
          %s173 = smul.addr %s172, 64
          %s174 = scalar_lea.hbm %s0, %s173
          %s176 = sshll.u32 %s166, 4
          %s177 = int_to_ptr.vmem [resolvable:$true] %s176
          %179 = dma.hbm_to_vmem [thread:$0]  %s174, 128, %s177, %s163
        $region20: #{tpu_custom_call.1} parent=15 // pred_fallthru
          _
        // Predicated region
        $region21: #{tpu_custom_call.1} parent=15 // pred_check
          %p180 = pneg %p80
        $region22: #{tpu_custom_call.1} parent=15 // pred_check_branch
          %182 = sbr.rel (%p180) target = $region24
        $region23: #{tpu_custom_call.1} parent=15 // pred_region
          %s183 = sand.u32 %s70, 1
          %s184 = scalar_lea.sflag [#allocation6], %s183
          %s185 = sand.u32 %s70, 1
          %s186 = smul.addr %s185, 2
          %s187 = scalar_lea.vmem [#allocation5], %s186
          %s188 = smul.u32 2, %s26
          %s190 = ssub.s32 32, 32
          %191 = vsyncadd %s184, %s190
          %s192 = smul.addr %s25, 2
          %s193 = sadd.s32 %s188, %s192
          %s194 = smul.addr %s193, 16
          %s195 = scalar_lea.hbm %s1, %s194
          %s197 = sshll.u32 %s187, 4
          %s198 = int_to_ptr.vmem [resolvable:$true] %s197
          %200 = dma.hbm_to_vmem [thread:$0]  %s195, 32, %s198, %s184
        $region24: #{tpu_custom_call.1} parent=15 // pred_fallthru
          _
        // Predicated region
        $region25: #{tpu_custom_call.1} parent=15 // pred_check
          %p201 = pneg %p108
        $region26: #{tpu_custom_call.1} parent=15 // pred_check_branch
          %203 = sbr.rel (%p201) target = $region28
        $region27: #{tpu_custom_call.1} parent=15 // pred_region
          %s204 = smul.u32 2, %s26
          %p205 = scmp.lt.s32.totalorder %s25, 1
          %s206 = scalar_select %p205, %s25, 1
          %p207 = scmp.lt.s32.totalorder %s204, 1
          %s208 = scalar_select %p207, %s204, 1
          %s209 = smul.addr %s206, 2
          %s210 = sadd.s32 %s208, %s209
          %s211 = scalar_lea.vmem %s2, %s210
          %s212 = smul.u32 2, %s26
        $region28: #{tpu_custom_call.1} parent=15 // pred_fallthru
          _
      $region16: #{tpu_custom_call.1} parent=5 // pred_fallthru
        _
      %p213 = scmp.le.s32.totalorder 1, %s18
      %p214 = scmp.lt.s32.totalorder %s18, 3
      %p215 = pnand %p213, %p214
      %p216 = pneg %p215
      // Predicated region
      $region29: #{tpu_custom_call.1} parent=5 // pred_check
        _
      $region30: #{tpu_custom_call.1} parent=5 // pred_check_branch
        %218 = sbr.rel (%p215) target = $region32
      $region31: #{tpu_custom_call.1} parent=5 // pred_region
        %s219 = ssub.s32 %s18, 1
        %s220 = sand.u32 %s45, 1
        %s221 = scalar_lea.sflag [#allocation3], %s220
        %s222 = sand.u32 %s45, 1
        %s223 = smul.addr %s222, 8
        %s224 = scalar_lea.vmem [#allocation2], %s223
        // Predicated region
        $region33: #{tpu_custom_call.1} parent=31 // pred_check
          %p225 = pneg %p58
        $region34: #{tpu_custom_call.1} parent=31 // pred_check_branch
          %227 = sbr.rel (%p225) target = $region36
        $region35: #{tpu_custom_call.1} parent=31 // pred_region
          %228 = dma.done %s221, 128
        $region36: #{tpu_custom_call.1} parent=31 // pred_fallthru
          _
        %s229 = sand.u32 %s73, 1
        %s230 = scalar_lea.sflag [#allocation6], %s229
        %s231 = sand.u32 %s73, 1
        %s232 = smul.addr %s231, 2
        %s233 = scalar_lea.vmem [#allocation5], %s232
        // Predicated region
        $region37: #{tpu_custom_call.1} parent=31 // pred_check
          %p234 = pneg %p86
        $region38: #{tpu_custom_call.1} parent=31 // pred_check_branch
          %236 = sbr.rel (%p234) target = $region40
        $region39: #{tpu_custom_call.1} parent=31 // pred_region
          %237 = dma.done %s230, 32
        $region40: #{tpu_custom_call.1} parent=31 // pred_fallthru
          _
        %s238 = sand.u32 %s45, 1
        %s239 = scalar_lea.sflag [#allocation3], %s238
        %s240 = sand.u32 %s45, 1
        %s241 = smul.addr %s240, 8
        %s242 = scalar_lea.vmem [#allocation2], %s241
        %p243 = pneg %p58
        %p244 = pneg %p55
        %s245 = sand.u32 %s73, 1
        %s246 = scalar_lea.sflag [#allocation6], %s245
        %s247 = sand.u32 %s73, 1
        %s248 = smul.addr %s247, 2
        %s249 = scalar_lea.vmem [#allocation5], %s248
        %p250 = pneg %p86
        %p251 = pneg %p83
        %s252 = smul.u32 2, %s28
        %p253 = scmp.lt.s32.totalorder %s27, 1
        %s254 = scalar_select %p253, %s27, 1
        %p255 = scmp.lt.s32.totalorder %s252, 1
        %s256 = scalar_select %p255, %s252, 1
        %s257 = smul.addr %s254, 2
        %s258 = sadd.s32 %s256, %s257
        %s259 = scalar_lea.vmem %s2, %s258
        %p260 = pneg %p114
        %p261 = pneg %p111
        %p262 = pneg %p140
        %p263 = pneg %p137
        %s264 = sand.u32 %s127, 1
        %s265 = scalar_lea.sflag [#allocation4], %s264
        %s266 = sand.u32 %s127, 1
        %s267 = smul.addr %s266, 2
        %s268 = scalar_lea.vmem [#allocation7], %s267
        %s269 = smul.u32 2, %s28
        %s270 = smul.u32 2, %s28
        %s271 = smul.u32 2, %s28
        %p272 = scmp.lt.s32.totalorder %s27, 1
        %s273 = scalar_select %p272, %s27, 1
        %p274 = scmp.lt.s32.totalorder %s271, 1
        %s275 = scalar_select %p274, %s271, 1
        %s276 = smul.addr %s273, 2
        %s277 = sadd.s32 %s275, %s276
        %s278 = scalar_lea.vmem %s2, %s277
        %s279 = smul.u32 2, %s28
        %p280 = scmp.eq.s32.totalorder %s28, 0
        // Predicated region
        $region41: #{tpu_custom_call.1} parent=31 // pred_check
          %p281 = pneg %p280
        $region42: #{tpu_custom_call.1} parent=31 // pred_check_branch
          %283 = sbr.rel (%p281) target = $region44
        $region43: #{tpu_custom_call.1} parent=31 // pred_region
          %v284 = vlaneseq
          %vm285 = vcmp.ge.s32.totalorder %v284, 0
          %vm286 = vcmp.lt.s32.totalorder %v284, 256
          %vm287 = vmand %vm285, %vm286
          %288 = vst.msk [vmem:[%s268] sm:$0x3] %vm287, 0.0
        $region44: #{tpu_custom_call.1} parent=31 // pred_fallthru
          _
        %v289 = vld [vmem:[%s224] sm:$0xff]
        %v291 = vcombine.high %v289, %v289
        %vm293 = vcmask 1043456
        %v294 = vsel %vm293, %v289, -inf
        %v295 = vrot.slane %v294, 4
        %v296 = vmax.f32 %v294, %v295
        %v297 = vrot.slane %v296, 2
        %v298 = vmax.f32 %v296, %v297
        %v299 = vrot.slane %v298, 1
        %v300 = vmax.f32 %v298, %v299
        %v301 = vsel %vm293, %v291, -inf
        %v302 = vrot.slane %v301, 4
        %v303 = vmax.f32 %v301, %v302
        %v304 = vrot.slane %v303, 2
        %v305 = vmax.f32 %v303, %v304
        %v306 = vrot.slane %v305, 1
        %v307 = vmax.f32 %v305, %v306
        %v310 = vcombine.low %v300, %v307
        %v312 = vsub.f32 %v289, %v310
        %v313 = vmul.f32 %v312, 1.442695
        %v314 = vpow.pop %v313
        %v316 = vcombine.high %v314, %v314
        %v318 = vsel %vm293, %v314, 0.0
        %v319 = vrot.slane %v318, 4
        %v320 = vadd.f32 %v318, %v319
        %v321 = vrot.slane %v320, 2
        %v322 = vadd.f32 %v320, %v321
        %v323 = vrot.slane %v322, 1
        %v324 = vadd.f32 %v322, %v323
        %v325 = vsel %vm293, %v316, 0.0
        %v326 = vrot.slane %v325, 4
        %v327 = vadd.f32 %v325, %v326
        %v328 = vrot.slane %v327, 2
        %v329 = vadd.f32 %v327, %v328
        %v330 = vrot.slane %v329, 1
        %v331 = vadd.f32 %v329, %v330
        %v332 = vlog2.pop %v324
        %v333 = vmul.f32 %v332, 0.6931472
        %v334 = vlog2.pop %v331
        %v335 = vmul.f32 %v334, 0.6931472
        %v336 = vadd.f32 %v333, %v300
        %v337 = vadd.f32 %v335, %v307
        %v338 = vlaneseq
        %v339 = vshrl.u32 %v338, 7
        %v340 = vld [vmem:[%s233] sm:$0x3]
        %v341 = vlaneseq
        %v342 = vshrl.u32 %v341, 7
        %v343 = vsub.s32 0, %v342
        %v344 = vrot.slane %v340, %v343
        %v345 = vlaneseq
        %v346 = vshrl.u32 %v345, 7
        %v347 = vsub.s32 1, %v346
        %v348 = vrot.slane %v340, %v347
        %vm349 = vcmp.eq.s32.totalorder %v339, %v344
        %vm350 = vcmp.eq.s32.totalorder %v339, %v348
        %v351 = vsel %vm349, %v289, 0.0
        %v352 = vsel %vm350, %v291, 0.0
        %v353 = vsel %vm293, %v351, 0.0
        %v354 = vrot.slane %v353, 4
        %v355 = vadd.f32 %v353, %v354
        %v356 = vrot.slane %v355, 2
        %v357 = vadd.f32 %v355, %v356
        %v358 = vrot.slane %v357, 1
        %v359 = vadd.f32 %v357, %v358
        %v360 = vsel %vm293, %v352, 0.0
        %v361 = vrot.slane %v360, 4
        %v362 = vadd.f32 %v360, %v361
        %v363 = vrot.slane %v362, 2
        %v364 = vadd.f32 %v362, %v363
        %v365 = vrot.slane %v364, 1
        %v366 = vadd.f32 %v364, %v365
        %v367 = vld [vmem:[%s278] sm:$0x3]
        %v368 = vsub.f32 %v336, %v359
        %v369 = vsub.f32 %v337, %v366
        %v372 = vcombine.low %v368, %v369
        %v374 = vunpack.c.l.s4 1966171168
        %v375 = vunpack.c.0.s8 %v374
        %v376 = vlaneseq
        %v377 = vshrl.u32 %v376, 7
        %v378 = vsub.s32 %v375, %v377
        %v379 = vrot.slane %v372, %v378
        %v381 = vunpack.c.l.s4 1966171168
        %v382 = vunpack.c.0.s8 %v381
        %v383 = vlaneseq
        %v384 = vshrl.u32 %v383, 7
        %v385 = vsub.s32 %v382, %v384
        %v386 = vrot.slane %v379, %v385
        %v388 = vmul.f32 %v367, %v386
        %v389 = vld [vmem:[%s268] sm:$0x3]
        %v390 = vadd.f32 %v389, %v388
        %v391 = vlaneseq
        %vm392 = vcmp.ge.s32.totalorder %v391, 0
        %vm393 = vcmp.lt.s32.totalorder %v391, 256
        %vm394 = vmand %vm392, %vm393
        %395 = vst.msk [vmem:[%s268] sm:$0x3] %vm394, %v390
        %s396 = sand.u32 %s127, 1
        %s397 = scalar_lea.sflag [#allocation4], %s396
        %s398 = sand.u32 %s127, 1
        %s399 = smul.addr %s398, 2
        %s400 = scalar_lea.vmem [#allocation7], %s399
        // Predicated region
        $region45: #{tpu_custom_call.1} parent=31 // pred_check
          %p401 = pneg %p137
        $region46: #{tpu_custom_call.1} parent=31 // pred_check_branch
          %403 = sbr.rel (%p401) target = $region48
        $region47: #{tpu_custom_call.1} parent=31 // pred_region
          %s405 = ssub.s32 32, 32
          %406 = vsyncadd %s397, %s405
          %s407 = smul.addr %s27, 2
          %s408 = smul.addr %s407, 16
          %s409 = scalar_lea.hbm %s3, %s408
          %s411 = sshll.u32 %s400, 4
          %s412 = int_to_ptr.vmem [resolvable:$true] %s411
          %414 = dma.vmem_to_hbm [thread:$0]  %s412, 32, %s409, %s397
        $region48: #{tpu_custom_call.1} parent=31 // pred_fallthru
          _
      $region32: #{tpu_custom_call.1} parent=5 // pred_fallthru
        _
      %p415 = scmp.le.s32.totalorder 2, %s18
      // Predicated region
      $region49: #{tpu_custom_call.1} parent=5 // pred_check
        %p416 = pneg %p415
      $region50: #{tpu_custom_call.1} parent=5 // pred_check_branch
        %418 = sbr.rel (%p416) target = $region52
      $region51: #{tpu_custom_call.1} parent=5 // pred_region
        %s419 = ssub.s32 %s18, 2
        // Predicated region
        $region53: #{tpu_custom_call.1} parent=51 // pred_check
          %p420 = pneg %p143
        $region54: #{tpu_custom_call.1} parent=51 // pred_check_branch
          %422 = sbr.rel (%p420) target = $region56
        $region55: #{tpu_custom_call.1} parent=51 // pred_region
          %s423 = sand.u32 %s128, 1
          %s424 = scalar_lea.sflag [#allocation4], %s423
          %s425 = sand.u32 %s128, 1
          %s426 = smul.addr %s425, 2
          %s427 = scalar_lea.vmem [#allocation7], %s426
          %428 = dma.done %s424, 32
        $region56: #{tpu_custom_call.1} parent=51 // pred_fallthru
          _
      $region52: #{tpu_custom_call.1} parent=5 // pred_fallthru
        _
    $region6: #{tpu_custom_call.1} parent=1 // loop_footer
      %s22 = sadd.s32 1, %s18
    $region7: #{tpu_custom_call.1} parent=1 // loop_footer_branch
      %17 = sbr.rel target = $region3
    $region8: #{tpu_custom_call.1} parent=1 // loop_exit
      _
    %429 = vsyncpa [#allocation3], 1
    %s430 = scalar_lea.sflag [#allocation3], 1
    %431 = vsyncpa %s430, 1
    %432 = vsyncpa [#allocation6], 1
    %s433 = scalar_lea.sflag [#allocation6], 1
    %434 = vsyncpa %s433, 1
    %435 = vsyncpa [#allocation4], 1
    %s436 = scalar_lea.sflag [#allocation4], 1
    %437 = vsyncpa %s436, 1

</llo_original>
